<compile_context>
chip_gen: v6e
topology: v6e:2x2x1
jax: 0.10.0
libtpu: 0.0.40
codegen_flags: <defaults>
</compile_context>

<pallas_src>
import math

import jax
import jax.numpy as jnp
from jax.experimental import pallas as pl
from jax.experimental.pallas import tpu as pltpu


def _fused_affine_kernel(x_ref, w_ref, b_ref, o_ref):
    # Single (TM, K) @ (K, N) matmul on the MXU, f32 accumulation,
    # f32 bias add on the VPU.
    y = jnp.dot(x_ref[...], w_ref[...], preferred_element_type=jnp.float32)
    o_ref[...] = (y + b_ref[...]).astype(o_ref.dtype)


def fuse_affine_params(params):
    """Collapse a stack of activation-free Linear layers into one affine map.

    params: list of (W (in,out), b (out,)) pairs.
    Returns (W_fused (in0, outN), b_fused (outN,)) such that
        x @ W_fused + b_fused == ((x @ W1 + b1) @ W2 + b2) @ W3 + b3
    (exactly, up to fp32 rounding).
    """
    w, b = params[0]
    w = jnp.asarray(w, jnp.float32)
    b = jnp.asarray(b, jnp.float32)
    for wn, bn in params[1:]:
        wn = jnp.asarray(wn, jnp.float32)
        bn = jnp.asarray(bn, jnp.float32)
        w = w @ wn
        b = b @ wn + bn
    return w, b


def mlp_forward(x, params, *, block_rows=2048, use_bf16=False):
    """Forward pass of the MLP via a single Pallas kernel.

    x: (B, input_features) float32.
    params: list of (W (in,out), b (out,)) pairs (same as the nn.Module stack).
    block_rows: batch tile size (rows per grid step) for large batches.
    use_bf16: cast MXU operands (x, fused W) to bf16; accumulation stays f32.
    """
    w, b = fuse_affine_params(params)          # (K, N), (N,)
    B, K = x.shape
    N = w.shape[1]
    b2d = b.reshape(1, N)                      # (1, N) so it broadcasts on TPU

    if use_bf16:
        x_in = x.astype(jnp.bfloat16)
        w_in = w.astype(jnp.bfloat16)
    else:
        x_in = x
        w_in = w

    # Choose the batch tile.  Small batches are handled as one full block
    # (block shape == full array dims is always legal); large batches are
    # padded up to a multiple of block_rows so every tile is full.
    if B <= block_rows:
        TM = B
        x_p = x_in
    else:
        TM = block_rows
        pad = (-B) % TM
        x_p = jnp.pad(x_in, ((0, pad), (0, 0))) if pad else x_in
    Bp = x_p.shape[0]
    grid = (Bp // TM,)

    out = pl.pallas_call(
        _fused_affine_kernel,
        out_shape=jax.ShapeDtypeStruct((Bp, N), jnp.float32),
        grid=grid,
        in_specs=[
            pl.BlockSpec((TM, K), lambda i: (i, 0)),   # x tile, pipelined
            pl.BlockSpec((K, N), lambda i: (0, 0)),    # fused W, VMEM-resident
            pl.BlockSpec((1, N), lambda i: (0, 0)),    # fused b, VMEM-resident
        ],
        out_specs=pl.BlockSpec((TM, N), lambda i: (i, 0)),
        compiler_params=pltpu.CompilerParams(
            dimension_semantics=("parallel",),         # v7x: shard tiles over 2 TCs
        ),
    )(x_p, w_in, b2d)

    return out[:B]


def init_params(key, layer_dims):
    """Deterministic init mimicking torch.nn.Linear (uniform +/- 1/sqrt(fan_in)).

    Weights returned in (in, out) layout (transpose of torch's (out, in))."""
    params = []
    for d_in, d_out in zip(layer_dims[:-1], layer_dims[1:]):
        key, kw, kb = jax.random.split(key, 3)
        bound = 1.0 / math.sqrt(d_in)
        w = jax.random.uniform(kw, (d_in, d_out), jnp.float32, -bound, bound)
        bias = jax.random.uniform(kb, (d_out,), jnp.float32, -bound, bound)
        params.append((w, bias))
    return params


def mlp_reference(x, params):
    h = x
    for w, bias in params:
        h = h @ w + bias
    return h


if __name__ == "__main__":
    input_features = 26
    output_features = 4
    layer_dims = [input_features, 128, 32, output_features]

    key = jax.random.PRNGKey(0)
    key, kx, kx2 = jax.random.split(key, 3)
    params = init_params(key, layer_dims)

    # Small batch (single full block, grid of 1).
    batch = 8
    x = jax.random.normal(kx, (batch, input_features), jnp.float32)
    out = mlp_forward(x, params)
    jax.block_until_ready(out)
    ref = mlp_reference(x, params)
    assert out.shape == (batch, output_features), out.shape
    assert jnp.allclose(out, ref, atol=1e-4, rtol=1e-4), (
        float(jnp.max(jnp.abs(out - ref))))

    # Larger batch exercising the tiled / padded grid path.
    batch2 = 300
    x2 = jax.random.normal(kx2, (batch2, input_features), jnp.float32)
    out2 = mlp_forward(x2, params, block_rows=128)   # grid of 3 tiles (padded)
    jax.block_until_ready(out2)
    ref2 = mlp_reference(x2, params)
    assert out2.shape == (batch2, output_features), out2.shape
    assert jnp.allclose(out2, ref2, atol=1e-4, rtol=1e-4), (
        float(jnp.max(jnp.abs(out2 - ref2))))

    # bf16-operand path (f32 accumulation), looser tolerance.
    out_bf16 = mlp_forward(x2, params, block_rows=128, use_bf16=True)
    jax.block_until_ready(out_bf16)
    assert jnp.allclose(out_bf16, ref2, atol=5e-2, rtol=5e-2), (
        float(jnp.max(jnp.abs(out_bf16 - ref2))))

    print("KERNEL_OK")
</pallas_src>

<mosaic_0001>
module attributes {stable_mosaic.version = 11 : i64} {
  func.func @_fused_affine_kernel(%arg0: i32, %arg1: memref<8x26xf32, #tpu.memory_space<vmem>>, %arg2: memref<26x4xf32, #tpu.memory_space<vmem>>, %arg3: memref<1x4xf32, #tpu.memory_space<vmem>>, %arg4: memref<8x4xf32, #tpu.memory_space<vmem>>) attributes {dimension_semantics = [#tpu.dimension_semantics<parallel>], iteration_bounds = array<i64: 1>, scalar_prefetch = 0 : i64, scratch_operands = 0 : i64, tpu.core_type = #tpu.core_type<tc>, window_params = [{transform_indices = @transform_0, window_bounds = array<i64: 8, 26>}, {pipeline_mode = #tpu.pipeline_mode<synchronous>, transform_indices = @transform_1, window_bounds = array<i64: 26, 4>}, {pipeline_mode = #tpu.pipeline_mode<synchronous>, transform_indices = @transform_2, window_bounds = array<i64: 1, 4>}, {transform_indices = @transform_3, window_bounds = array<i64: 8, 4>}]} {
    %c0 = arith.constant 0 : index
    %c0_0 = arith.constant 0 : index
    %0 = vector.load %arg1[%c0, %c0_0] : memref<8x26xf32, #tpu.memory_space<vmem>>, vector<8x26xf32>
    %c0_1 = arith.constant 0 : index
    %c0_2 = arith.constant 0 : index
    %1 = vector.load %arg2[%c0_1, %c0_2] : memref<26x4xf32, #tpu.memory_space<vmem>>, vector<26x4xf32>
    %cst = arith.constant dense<0.000000e+00> : vector<8x4xf32>
    %2 = tpu.matmul %0, %1, %cst {dimension_numbers = #tpu.dot_dimension_numbers<[1], [0], [0], [1], [0, 0, 1, 1], [], []>} : vector<8x26xf32>, vector<26x4xf32>, vector<8x4xf32> -> vector<8x4xf32>
    %c0_3 = arith.constant 0 : index
    %c0_4 = arith.constant 0 : index
    %3 = vector.load %arg3[%c0_3, %c0_4] : memref<1x4xf32, #tpu.memory_space<vmem>>, vector<1x4xf32>
    %4 = vector.broadcast %3 : vector<1x4xf32> to vector<8x4xf32>
    %5 = arith.addf %2, %4 : vector<8x4xf32>
    %c0_5 = arith.constant 0 : index
    %c0_6 = arith.constant 0 : index
    %6 = vector.load %arg4[%c0_5, %c0_6] : memref<8x4xf32, #tpu.memory_space<vmem>>, vector<8x4xf32>
    tpu.vector_store %arg4[%c0_5, %c0_6], %5 {strides = array<i32>} : memref<8x4xf32, #tpu.memory_space<vmem>>, vector<8x4xf32>,
    return
  }
  func.func @transform_0(%arg0: i32) -> (i32, i32) {
    %c0_i32 = arith.constant 0 : i32
    %c0_i32_0 = arith.constant 0 : i32
    return %arg0, %c0_i32 : i32, i32
  }
  func.func @transform_1(%arg0: i32) -> (i32, i32) {
    %c0_i32 = arith.constant 0 : i32
    %c0_i32_0 = arith.constant 0 : i32
    %c0_i32_1 = arith.constant 0 : i32
    return %c0_i32, %c0_i32_0 : i32, i32
  }
  func.func @transform_2(%arg0: i32) -> (i32, i32) {
    %c0_i32 = arith.constant 0 : i32
    %c0_i32_0 = arith.constant 0 : i32
    %c0_i32_1 = arith.constant 0 : i32
    return %c0_i32, %c0_i32_0 : i32, i32
  }
  func.func @transform_3(%arg0: i32) -> (i32, i32) {
    %c0_i32 = arith.constant 0 : i32
    %c0_i32_0 = arith.constant 0 : i32
    return %arg0, %c0_i32 : i32, i32
  }
}

</mosaic_0001>

<llo_original>
// kernel: tpu_custom_call.1
$region0: #{tpu_custom_call.1}
  #allocation0 [shape = 'u32[]', space=smem, size = 0x4, offset = 0x4, fixed_abs, tag = 'smem constant byte address 0x4 - core index']
  #allocation1 [shape = 'u32[144,128]{1,0:T(1,128)}', space=vmem, size = 0x12000, scoped, tag = 'internal scratch']
  %s0 = inlined_call_operand.vmem [shape: f32[8,26], index: 0, kind: input, shape index: {}]
  %s1 = inlined_call_operand.vmem [shape: f32[26,4], index: 1, kind: input, shape index: {}]
  %s2 = inlined_call_operand.vmem [shape: f32[1,4], index: 2, kind: input, shape index: {}]
  %s3 = inlined_call_operand.vmem [shape: f32[8,4], index: 3, kind: output, shape index: {}]
  %s4 = sld [smem:[#allocation0]]
  $region22: #{tpu_custom_call.1} parent=0
    _
  %s6 = ssub.s32 1, %s4
  %s7 = scalar_select 0, %s6, %s4
  // Predicated region
  $region2: #{tpu_custom_call.1} parent=0 // pred_check
    _
  $region3: #{tpu_custom_call.1} parent=0 // pred_check_branch
    %9 = sbr.rel (0) target = $region5
  $region4: #{tpu_custom_call.1} parent=0 // pred_region
    _
  $region5: #{tpu_custom_call.1} parent=0 // pred_fallthru
    _
  // Predicated region
  $region6: #{tpu_custom_call.1} parent=0 // pred_check
    _
  $region7: #{tpu_custom_call.1} parent=0 // pred_check_branch
    %11 = sbr.rel (0) target = $region9
  $region8: #{tpu_custom_call.1} parent=0 // pred_region
    _
  $region9: #{tpu_custom_call.1} parent=0 // pred_fallthru
    _
  // Predicated region
  $region10: #{tpu_custom_call.1} parent=0 // pred_check
    _
  $region11: #{tpu_custom_call.1} parent=0 // pred_check_branch
    %13 = sbr.rel (0) target = $region13
  $region12: #{tpu_custom_call.1} parent=0 // pred_region
    _
  $region13: #{tpu_custom_call.1} parent=0 // pred_fallthru
    _
  %v14 = vld [vmem:[%s0] sm:$0xff]
  %v15 = vld [vmem:[%s1] sm:$0xff]
  %v16 = vld [vmem:[%s1 + $0x8] sm:$0xff]
  %v17 = vld [vmem:[%s1 + $0x10] sm:$0xff]
  %v18 = vld [vmem:[%s1 + $0x18] sm:$0x3]
  %v19 = vld [vmem:[%s2] sm:$0x1]
  %v21 = vlaneseq
  %v22 = vshrl.u32 %v21, 7
  %v23 = vsub.s32 0, %v22
  %v24 = vrot.slane %v19, %v23
  %vm26 = vcmask 211968
  %v28 = vsel %vm26, %v14, 0
  %vm30 = vcmask 1041408
  %v32 = vsel %vm30, %v18, 0
  %34 = vmatprep.subr.mxu0 0.0
  %35 = vmatpush1.msra.mxu0 0.0
  %36 = vmatprep.subr.mxu0 0.0
  %37 = vmatpush1.msra.mxu0 0.0
  %38 = vmatprep.subr.mxu0 0.0
  %39 = vmatpush1.msra.mxu0 0.0
  %40 = vmatprep.subr.mxu0 0.0
  %41 = vmatpush1.msra.mxu0 0.0
  %42 = vmatprep.subr.mxu0 0.0
  %43 = vmatpush1.msra.mxu0 0.0
  %44 = vmatprep.subr.mxu0 0.0
  %45 = vmatpush1.msra.mxu0 0.0
  %46 = vmatprep.subr.mxu0 0.0
  %47 = vmatpush1.msra.mxu0 0.0
  %48 = vmatprep.subr.mxu0 0.0
  %49 = vmatpush1.msra.mxu0 0.0
  %50 = vmatprep.subr.mxu0 0.0
  %51 = vmatpush1.msra.mxu0 0.0
  %52 = vmatprep.subr.mxu0 0.0
  %53 = vmatpush1.msra.mxu0 0.0
  %54 = vmatprep.subr.mxu0 0.0
  %55 = vmatpush1.msra.mxu0 0.0
  %56 = vmatprep.subr.mxu0 0.0
  %57 = vmatpush1.msra.mxu0 0.0
  %58 = vmatprep.subr.mxu0 0.0
  %59 = vmatpush1.msra.mxu0 %v32
  %60 = vmatprep.subr.mxu0 0.0
  %61 = vmatpush1.msra.mxu0 %v17
  %62 = vmatprep.subr.mxu0 0.0
  %63 = vmatpush1.msra.mxu0 %v16
  %64 = vmatprep.subr.mxu0 0.0
  %65 = vmatpush1.msra.mxu0 %v15
  %66 = vmatprep.subr.mxu0 0.0
  %67 = vmatpush2.msra.mxu0 0.0
  %68 = vmatprep.subr.mxu0 0.0
  %69 = vmatpush2.msra.mxu0 0.0
  %70 = vmatprep.subr.mxu0 0.0
  %71 = vmatpush2.msra.mxu0 0.0
  %72 = vmatprep.subr.mxu0 0.0
  %73 = vmatpush2.msra.mxu0 0.0
  %74 = vmatprep.subr.mxu0 0.0
  %75 = vmatpush2.msra.mxu0 0.0
  %76 = vmatprep.subr.mxu0 0.0
  %77 = vmatpush2.msra.mxu0 0.0
  %78 = vmatprep.subr.mxu0 0.0
  %79 = vmatpush2.msra.mxu0 0.0
  %80 = vmatprep.subr.mxu0 0.0
  %81 = vmatpush2.msra.mxu0 0.0
  %82 = vmatprep.subr.mxu0 0.0
  %83 = vmatpush2.msra.mxu0 0.0
  %84 = vmatprep.subr.mxu0 0.0
  %85 = vmatpush2.msra.mxu0 0.0
  %86 = vmatprep.subr.mxu0 0.0
  %87 = vmatpush2.msra.mxu0 0.0
  %88 = vmatprep.subr.mxu0 0.0
  %89 = vmatpush2.msra.mxu0 0.0
  %90 = vmatprep.subr.mxu0 0.0
  %91 = vmatpush2.msra.mxu0 0.0
  %92 = vmatprep.subr.mxu0 0.0
  %93 = vmatpush2.msra.mxu0 0.0
  %94 = vmatprep.subr.mxu0 0.0
  %95 = vmatpush2.msra.mxu0 0.0
  %96 = vmatprep.subr.mxu0 0.0
  %97 = vmatpush2.msra.mxu0 0.0
  %98 = vmatprep.mubr.f32.mxu0 0.0
  %99 = vmatmul.mubr.f32.gmra.mxu0 %v28
  %v100 = vpop.f32.mrf.mxu0
  %v101 = vadd.f32 %v24, %v100
  %v102 = vpop.f32.mrf.mxu0
  %103 = vdwg.mxu0
  %vm104 = vcmask 31744
  %105 = vst.msk [vmem:[%s3] sm:$0xff] %vm104, %v101
  // Predicated region
  $region14: #{tpu_custom_call.1} parent=0 // pred_check
    _
  $region15: #{tpu_custom_call.1} parent=0 // pred_check_branch
    %107 = sbr.rel (0) target = $region17
  $region16: #{tpu_custom_call.1} parent=0 // pred_region
    _
  $region17: #{tpu_custom_call.1} parent=0 // pred_fallthru
    _
  // Predicated region
  $region18: #{tpu_custom_call.1} parent=0 // pred_check
    _
  $region19: #{tpu_custom_call.1} parent=0 // pred_check_branch
    %109 = sbr.rel (0) target = $region21
  $region20: #{tpu_custom_call.1} parent=0 // pred_region
    _
  $region21: #{tpu_custom_call.1} parent=0 // pred_fallthru
    _

</llo_original>
